<compile_context>
chip_gen: v7x
topology: tpu7x:2x2x1
jax: 0.10.0
libtpu: 0.0.40
codegen_flags: <defaults>
</compile_context>

<pallas_src>
import functools
import math

import jax
import jax.numpy as jnp
from jax.experimental import pallas as pl
from jax.experimental.pallas import tpu as pltpu

# Module hyper-parameters (compile-time constants, overridable per call).
BETA = 0.9
THRESHOLD = 1.0
SLOPE = 10.0

_LANE = 128
_SUBLANE = 8
_DEFAULT_BLOCK_ROWS = 4096            # 4096 x 128 x f32 = 2 MiB per block
_VMEM_LIMIT_BYTES = 48 * 1024 * 1024  # explicit; safe on v5e/v6e/v7x


def _round_up(a, b):
    return ((a + b - 1) // b) * b


def _sigmoid(z):
    # Single EUP transcendental (tanh); identical expression in kernel and
    # reference so results match.
    return 0.5 * (jnp.tanh(0.5 * z) + 1.0)


def _row_plan(n_elems, max_block_rows):
    """Plan the lane-dense [rows_p, 128] f32 slab and row-block size.

    rows_p is a multiple of br; br is a multiple of 8 (so every block obeys
    the (8,128) constraint).  When the slab is small we split it into two
    blocks if that needs no extra padding, so v7x's two TensorCores can both
    work the "parallel" grid axis.
    """
    rows = -(-max(n_elems, 1) // _LANE)               # ceil(n / 128)
    rows8 = _round_up(rows, _SUBLANE)
    max_br = max(_SUBLANE, (max_block_rows // _SUBLANE) * _SUBLANE)
    if rows8 <= max_br:
        if rows8 >= 2 * _SUBLANE and (rows8 // 2) % _SUBLANE == 0:
            br = rows8 // 2                            # 2 blocks, no extra pad
        else:
            br = rows8                                 # 1 block
    else:
        br = max_br
    rows_p = _round_up(rows8, br)
    return rows_p, br


def _to_slab(a, rows_p):
    """Flatten -> (pad only if needed) -> lane-dense [rows_p, 128] f32 slab."""
    flat = jnp.ravel(a).astype(jnp.float32)
    pad = rows_p * _LANE - flat.shape[0]
    if pad:
        flat = jnp.pad(flat, (0, pad))
    return flat.reshape(rows_p, _LANE)


def _to_slab_seq(a, rows_p):
    """[T, ...] -> [T, rows_p, 128] f32 slab (pad only if needed)."""
    t = a.shape[0]
    flat = a.reshape(t, -1).astype(jnp.float32)
    pad = rows_p * _LANE - flat.shape[1]
    if pad:
        flat = jnp.pad(flat, ((0, 0), (0, pad)))
    return flat.reshape(t, rows_p, _LANE)


def _from_slab(slab, shape):
    n = math.prod(shape) if shape else 1
    flat = slab.reshape(-1)
    if flat.shape[0] != n:
        flat = flat[:n]
    return flat.reshape(shape)


def _from_slab_seq(slab, t, shape):
    n = math.prod(shape) if shape else 1
    flat = slab.reshape(t, -1)
    if flat.shape[1] != n:
        flat = flat[:, :n]
    return flat.reshape((t,) + tuple(shape))


# ---------------------------------------------------------------------------
# Kernels
# ---------------------------------------------------------------------------
def _ts_leaky_step_kernel(x_ref, mem_ref, spk_ref, mem_out_ref, *,
                          beta, threshold, slope):
    """One TSLeakySurrogate.forward() call on a lane-dense (br, 128) tile."""
    mem = beta * mem_ref[...] + x_ref[...]
    spk = _sigmoid(slope * (mem - threshold))          # EUP (tanh)
    spk_ref[...] = spk
    mem_out_ref[...] = mem * (1.0 - spk)               # soft reset, same step


def _ts_leaky_seq_kernel(x_ref, mem0_ref, spk_ref, mem_out_ref, mem_scr, *,
                         beta, threshold, slope):
    """One time step of the fused sequence on a (br, 128) row block.

    Grid = (row_blocks "parallel", T "arbitrary").  The running membrane for
    the current row block lives in the VMEM scratch `mem_scr`: loaded from
    mem0 at t == 0, flushed to mem_out at t == T-1.  x[t] / spk[t] stream
    through (1, br, 128) pipelined blocks.
    """
    t = pl.program_id(1)

    @pl.when(t == 0)
    def _():
        mem_scr[...] = mem0_ref[...]

    mem = beta * mem_scr[...] + x_ref[0]
    spk = _sigmoid(slope * (mem - threshold))
    spk_ref[0] = spk
    mem_scr[...] = mem * (1.0 - spk)

    @pl.when(t == pl.num_programs(1) - 1)
    def _():
        mem_out_ref[...] = mem_scr[...]


# ---------------------------------------------------------------------------
# Wrappers
# ---------------------------------------------------------------------------
def ts_leaky_forward(x, mem=None, *, beta=BETA, threshold=THRESHOLD,
                     slope=SLOPE, block_rows=_DEFAULT_BLOCK_ROWS):
    """One TSLeakySurrogate.forward() call.  Returns (spk, new_mem)."""
    shape = x.shape
    n = math.prod(shape) if shape else 1
    if mem is None:                       # equivalent to module.reset(x)
        mem = jnp.zeros(shape, jnp.float32)

    rows_p, br = _row_plan(n, block_rows)
    x2 = _to_slab(x, rows_p)
    m2 = _to_slab(mem, rows_p)

    kernel = functools.partial(_ts_leaky_step_kernel, beta=float(beta),
                               threshold=float(threshold), slope=float(slope))
    spec = pl.BlockSpec((br, _LANE), lambda i: (i, 0))
    spk2, mem2 = pl.pallas_call(
        kernel,
        grid=(rows_p // br,),
        in_specs=(spec, spec),
        out_specs=(spec, spec),
        out_shape=(jax.ShapeDtypeStruct((rows_p, _LANE), jnp.float32),
                   jax.ShapeDtypeStruct((rows_p, _LANE), jnp.float32)),
        # Donate the (internally created) membrane slab to the mem output.
        input_output_aliases={1: 1},
        compiler_params=pltpu.CompilerParams(
            dimension_semantics=("parallel",),
            vmem_limit_bytes=_VMEM_LIMIT_BYTES),
    )(x2, m2)
    return _from_slab(spk2, shape), _from_slab(mem2, shape)


def ts_leaky_sequence(x_seq, mem0=None, *, beta=BETA, threshold=THRESHOLD,
                      slope=SLOPE, block_rows=_DEFAULT_BLOCK_ROWS):
    """T chained forward() calls fused into one kernel.

    x_seq: [T, *state_shape].  Returns (spk_seq [T, *state_shape], mem_final).
    """
    t_steps = x_seq.shape[0]
    state_shape = x_seq.shape[1:]
    n = math.prod(state_shape) if state_shape else 1
    if mem0 is None:
        mem0 = jnp.zeros(state_shape, jnp.float32)

    rows_p, br = _row_plan(n, block_rows)
    x3 = _to_slab_seq(x_seq, rows_p)      # [T, rows_p, 128]
    m2 = _to_slab(mem0, rows_p)           # [rows_p, 128]

    kernel = functools.partial(_ts_leaky_seq_kernel, beta=float(beta),
                               threshold=float(threshold), slope=float(slope))
    x_spec = pl.BlockSpec((1, br, _LANE), lambda i, t: (t, i, 0))
    st_spec = pl.BlockSpec((br, _LANE), lambda i, t: (i, 0))
    spk3, memf = pl.pallas_call(
        kernel,
        grid=(rows_p // br, t_steps),
        in_specs=(x_spec, st_spec),
        out_specs=(x_spec, st_spec),
        out_shape=(jax.ShapeDtypeStruct((t_steps, rows_p, _LANE), jnp.float32),
                   jax.ShapeDtypeStruct((rows_p, _LANE), jnp.float32)),
        scratch_shapes=[pltpu.VMEM((br, _LANE), jnp.float32)],
        input_output_aliases={1: 1},
        compiler_params=pltpu.CompilerParams(
            dimension_semantics=("parallel", "arbitrary"),
            vmem_limit_bytes=_VMEM_LIMIT_BYTES),
    )(x3, m2)

    spk_seq = _from_slab_seq(spk3, t_steps, state_shape)
    return spk_seq, _from_slab(memf, state_shape)


# ---------------------------------------------------------------------------
# Pure-JAX reference (exactly the PyTorch forward)
# ---------------------------------------------------------------------------
def reference_step(x, mem, beta=BETA, threshold=THRESHOLD, slope=SLOPE):
    mem = beta * mem + x
    spk = _sigmoid(slope * (mem - threshold))
    return spk, mem * (1.0 - spk)


if __name__ == "__main__":
    # Small deterministic problem consistent with the module's usage:
    # x is an activation map [B, C, H, W]; the module is stepped T times.
    # NOTE: at these toy shapes the kernel is launch/DMA-overhead bound; the
    # tiling / lane-density / big-block wins only show up at production sizes.
    B, C, H, W = 2, 4, 16, 16
    T = 8

    key = jax.random.PRNGKey(0)
    k0, k1 = jax.random.split(key)
    x_seq = jax.random.normal(k0, (T, B, C, H, W), dtype=jnp.float32)
    mem0 = jnp.zeros((B, C, H, W), jnp.float32)   # module.reset(x)

    # --- one forward() call -------------------------------------------------
    spk, mem1 = ts_leaky_forward(x_seq[0], mem0)
    spk = jax.block_until_ready(spk)
    spk_ref, mem1_ref = reference_step(x_seq[0], mem0)
    assert spk.shape == (B, C, H, W)
    assert jnp.allclose(spk, spk_ref, atol=1e-5, rtol=1e-5), "spk mismatch"
    assert jnp.allclose(mem1, mem1_ref, atol=1e-5, rtol=1e-5), "mem mismatch"

    # --- T forward() calls fused into one kernel ----------------------------
    spk_seq, mem_final = ts_leaky_sequence(x_seq, mem0)
    spk_seq = jax.block_until_ready(spk_seq)

    mem = mem0
    refs = []
    for t in range(T):
        s, mem = reference_step(x_seq[t], mem)
        refs.append(s)
    refs = jnp.stack(refs, axis=0)

    assert spk_seq.shape == (T, B, C, H, W)
    assert jnp.allclose(spk_seq, refs, atol=1e-5, rtol=1e-5), "seq spk mismatch"
    assert jnp.allclose(mem_final, mem, atol=1e-5, rtol=1e-5), "final mem mismatch"

    # --- ragged (non-128-multiple) shape exercises the padded path ----------
    x_r = jax.random.normal(k1, (2, 3, 50), dtype=jnp.float32)
    m_r = jnp.zeros_like(x_r)
    spk_r, mem_r = ts_leaky_forward(x_r, m_r)
    spk_r = jax.block_until_ready(spk_r)
    spk_r_ref, mem_r_ref = reference_step(x_r, m_r)
    assert jnp.allclose(spk_r, spk_r_ref, atol=1e-5, rtol=1e-5), "ragged spk"
    assert jnp.allclose(mem_r, mem_r_ref, atol=1e-5, rtol=1e-5), "ragged mem"

    print("KERNEL_OK")
</pallas_src>

<mosaic_0001>
module attributes {stable_mosaic.version = 11 : i64} {
  func.func @_ts_leaky_step_kernel(%arg0: i32, %arg1: memref<8x128xf32, #tpu.memory_space<vmem>>, %arg2: memref<8x128xf32, #tpu.memory_space<vmem>>, %arg3: memref<8x128xf32, #tpu.memory_space<vmem>>, %arg4: memref<8x128xf32, #tpu.memory_space<vmem>>) attributes {dimension_semantics = [#tpu.dimension_semantics<parallel>], iteration_bounds = array<i64: 2>, scalar_prefetch = 0 : i64, scratch_operands = 0 : i64, tpu.core_type = #tpu.core_type<tc>, window_params = [{transform_indices = @transform_0, window_bounds = array<i64: 8, 128>}, {transform_indices = @transform_1, window_bounds = array<i64: 8, 128>}, {transform_indices = @transform_2, window_bounds = array<i64: 8, 128>}, {transform_indices = @transform_3, window_bounds = array<i64: 8, 128>}]} {
    %c0 = arith.constant 0 : index
    %c0_0 = arith.constant 0 : index
    %0 = vector.load %arg2[%c0, %c0_0] : memref<8x128xf32, #tpu.memory_space<vmem>>, vector<8x128xf32>
    %cst = arith.constant 0.899999976 : f32
    %1 = vector.broadcast %cst : f32 to vector<8x128xf32>
    %2 = arith.mulf %1, %0 : vector<8x128xf32>
    %c0_1 = arith.constant 0 : index
    %c0_2 = arith.constant 0 : index
    %3 = vector.load %arg1[%c0_1, %c0_2] : memref<8x128xf32, #tpu.memory_space<vmem>>, vector<8x128xf32>
    %4 = arith.addf %2, %3 : vector<8x128xf32>
    %cst_3 = arith.constant 1.000000e+00 : f32
    %5 = vector.broadcast %cst_3 : f32 to vector<8x128xf32>
    %6 = arith.subf %4, %5 : vector<8x128xf32>
    %cst_4 = arith.constant 1.000000e+01 : f32
    %7 = vector.broadcast %cst_4 : f32 to vector<8x128xf32>
    %8 = arith.mulf %7, %6 : vector<8x128xf32>
    %cst_5 = arith.constant 5.000000e-01 : f32
    %9 = vector.broadcast %cst_5 : f32 to vector<8x128xf32>
    %10 = arith.mulf %9, %8 : vector<8x128xf32>
    %11 = math.tanh %10 : vector<8x128xf32>
    %cst_6 = arith.constant 1.000000e+00 : f32
    %12 = vector.broadcast %cst_6 : f32 to vector<8x128xf32>
    %13 = arith.addf %11, %12 : vector<8x128xf32>
    %cst_7 = arith.constant 5.000000e-01 : f32
    %14 = vector.broadcast %cst_7 : f32 to vector<8x128xf32>
    %15 = arith.mulf %14, %13 : vector<8x128xf32>
    %c0_8 = arith.constant 0 : index
    %c0_9 = arith.constant 0 : index
    %16 = vector.load %arg3[%c0_8, %c0_9] : memref<8x128xf32, #tpu.memory_space<vmem>>, vector<8x128xf32>
    tpu.vector_store %arg3[%c0_8, %c0_9], %15 {strides = array<i32>} : memref<8x128xf32, #tpu.memory_space<vmem>>, vector<8x128xf32>,
    %cst_10 = arith.constant 1.000000e+00 : f32
    %17 = vector.broadcast %cst_10 : f32 to vector<8x128xf32>
    %18 = arith.subf %17, %15 : vector<8x128xf32>
    %19 = arith.mulf %4, %18 : vector<8x128xf32>
    %c0_11 = arith.constant 0 : index
    %c0_12 = arith.constant 0 : index
    %20 = vector.load %arg4[%c0_11, %c0_12] : memref<8x128xf32, #tpu.memory_space<vmem>>, vector<8x128xf32>
    tpu.vector_store %arg4[%c0_11, %c0_12], %19 {strides = array<i32>} : memref<8x128xf32, #tpu.memory_space<vmem>>, vector<8x128xf32>,
    return
  }
  func.func @transform_0(%arg0: i32) -> (i32, i32) {
    %c0_i32 = arith.constant 0 : i32
    %c0_i32_0 = arith.constant 0 : i32
    return %arg0, %c0_i32 : i32, i32
  }
  func.func @transform_1(%arg0: i32) -> (i32, i32) {
    %c0_i32 = arith.constant 0 : i32
    %c0_i32_0 = arith.constant 0 : i32
    return %arg0, %c0_i32 : i32, i32
  }
  func.func @transform_2(%arg0: i32) -> (i32, i32) {
    %c0_i32 = arith.constant 0 : i32
    %c0_i32_0 = arith.constant 0 : i32
    return %arg0, %c0_i32 : i32, i32
  }
  func.func @transform_3(%arg0: i32) -> (i32, i32) {
    %c0_i32 = arith.constant 0 : i32
    %c0_i32_0 = arith.constant 0 : i32
    return %arg0, %c0_i32 : i32, i32
  }
}

</mosaic_0001>

<llo_original>
// kernel: tpu_custom_call.1
$region0: #{tpu_custom_call.1}
  #allocation0 [shape = 'u32[]', space=smem, size = 0x4, offset = 0x4, fixed_abs, tag = 'smem constant byte address 0x4 - core index']
  #allocation1 [shape = 'u32[144,128]{1,0:T(1,128)}', space=vmem, size = 0x12000, scoped, tag = 'internal scratch']
  %s0 = inlined_call_operand.vmem [shape: f32[16,128], index: 0, kind: input, shape index: {}]
  %s1 = inlined_call_operand.hbm [shape: f32[16,128], index: 1, kind: input, shape index: {}, may-alias: {1,3}]
  %s2 = inlined_call_operand.hbm [shape: f32[16,128], index: 2, kind: output, shape index: {0}]
  %s3 = inlined_call_operand.hbm [shape: f32[16,128], index: 3, kind: output, shape index: {1}, may-alias: {1,3}]
  %4 = xla_tuple %s2, %s3
  %s5 = sld [smem:[#allocation0]]
  $region53: #{tpu_custom_call.1} parent=0
    _
  %s7 = ssub.s32 1, %s5
  %s8 = scalar_select 0, %s7, %s5
  $region1: #{tpu_custom_call.1} parent=0
    #allocation2 [shape = 'u8[8192]{0}', space=vmem, size = 0x2000, scoped, tag = 'input window, operand 1']
    #allocation3 [shape = 's32[2]{0}', space=sflag, size = 0x8, scoped, tag = 'scoped memory for tpu_custom_call.1']
    #allocation4 [shape = 's32[2]{0}', space=sflag, size = 0x8, scoped, tag = 'scoped memory for tpu_custom_call.1']
    #allocation5 [shape = 'u8[8192]{0}', space=vmem, size = 0x2000, scoped, tag = 'output window, operand 0']
    #allocation6 [shape = 'u8[8192]{0}', space=vmem, size = 0x2000, scoped, tag = 'output window, operand 1']
    #allocation7 [shape = 's32[2]{0}', space=sflag, size = 0x8, scoped, tag = 'scoped memory for tpu_custom_call.1']
    %9 = vsyncpa [#allocation3], 0
    %s10 = scalar_lea.sflag [#allocation3], 1
    %11 = vsyncpa %s10, 0
    %12 = vsyncpa [#allocation4], 0
    %s13 = scalar_lea.sflag [#allocation4], 1
    %14 = vsyncpa %s13, 0
    %15 = vsyncpa [#allocation7], 0
    %s16 = scalar_lea.sflag [#allocation7], 1
    %17 = vsyncpa %s16, 0
    loop: start=0, step=1, limit=4
    $region2: #{tpu_custom_call.1} parent=1 // loop_pre_header
      _
    $region3: #{tpu_custom_call.1} parent=1 // loop_header
      %s19 = sphi 0, %s23
      %p20 = scmp.ge.s32.totalorder %s19, 4
      %s29 = sphi 0, %s31
      %s32 = sphi 0, %s29
      %s33 = sphi 0, %s32
      %s49 = sphi 0, %s33
      %s55 = sphi 0, %s57
      %s58 = sphi 0, %s55
      %s59 = sphi 0, %s58
      %s75 = sphi 0, %s59
      %s81 = sphi 0, %s83
      %s84 = sphi 0, %s81
      %s85 = sphi 0, %s84
      %s101 = sphi 0, %s85
      %s107 = sphi 0, %s109
      %s110 = sphi 0, %s107
      %s111 = sphi 0, %s110
      %s127 = sphi 0, %s111
    $region4: #{tpu_custom_call.1} parent=1 // loop_header_branch
      %22 = sbr.rel (%p20) target = $region8
    $region5: #{tpu_custom_call.1} parent=1 // loop_body
      %s24 = ssub.s32 %s19, 1
      %s25 = ssub.s32 %s19, 2
      %s26 = sadd.s32 %s19, 1
      %s27 = ssub.s32 %s19, %s26
      %p28 = scmp.eq.s32.totalorder %s27, 0
      %s30 = sadd.s32 %s29, 1
      %s31 = scalar_select %p28, %s29, %s30
      %p34 = pneg %p28
      %p35 = scmp.eq.s32.totalorder %s19, 1
      %p36 = por %p34, %p35
      %p37 = scmp.ne.s32.totalorder %s29, %s32
      %p38 = scmp.eq.s32.totalorder %s19, 0
      %p39 = por %p37, %p38
      %p40 = scmp.ne.s32.totalorder %s29, %s32
      %p41 = scmp.eq.s32.totalorder %s24, 1
      %p42 = por %p40, %p41
      %p43 = scmp.ne.s32.totalorder %s32, %s33
      %p44 = scmp.eq.s32.totalorder %s24, 0
      %p45 = por %p43, %p44
      %p46 = scmp.ne.s32.totalorder %s32, %s33
      %p47 = scmp.eq.s32.totalorder %s25, 1
      %p48 = por %p46, %p47
      %p50 = scmp.ne.s32.totalorder %s33, %s49
      %p51 = scmp.eq.s32.totalorder %s25, 0
      %p52 = por %p50, %p51
      %s53 = ssub.s32 %s19, %s26
      %p54 = scmp.eq.s32.totalorder %s53, 0
      %s56 = sadd.s32 %s55, 1
      %s57 = scalar_select %p54, %s55, %s56
      %p60 = pneg %p54
      %p61 = scmp.eq.s32.totalorder %s19, 1
      %p62 = por %p60, %p61
      %p63 = scmp.ne.s32.totalorder %s55, %s58
      %p64 = scmp.eq.s32.totalorder %s19, 0
      %p65 = por %p63, %p64
      %p66 = scmp.ne.s32.totalorder %s55, %s58
      %p67 = scmp.eq.s32.totalorder %s24, 1
      %p68 = por %p66, %p67
      %p69 = scmp.ne.s32.totalorder %s58, %s59
      %p70 = scmp.eq.s32.totalorder %s24, 0
      %p71 = por %p69, %p70
      %p72 = scmp.ne.s32.totalorder %s58, %s59
      %p73 = scmp.eq.s32.totalorder %s25, 1
      %p74 = por %p72, %p73
      %p76 = scmp.ne.s32.totalorder %s59, %s75
      %p77 = scmp.eq.s32.totalorder %s25, 0
      %p78 = por %p76, %p77
      %s79 = ssub.s32 %s19, %s26
      %p80 = scmp.eq.s32.totalorder %s79, 0
      %s82 = sadd.s32 %s81, 1
      %s83 = scalar_select %p80, %s81, %s82
      %p86 = pneg %p80
      %p87 = scmp.eq.s32.totalorder %s19, 1
      %p88 = por %p86, %p87
      %p89 = scmp.ne.s32.totalorder %s81, %s84
      %p90 = scmp.eq.s32.totalorder %s19, 0
      %p91 = por %p89, %p90
      %p92 = scmp.ne.s32.totalorder %s81, %s84
      %p93 = scmp.eq.s32.totalorder %s24, 1
      %p94 = por %p92, %p93
      %p95 = scmp.ne.s32.totalorder %s84, %s85
      %p96 = scmp.eq.s32.totalorder %s24, 0
      %p97 = por %p95, %p96
      %p98 = scmp.ne.s32.totalorder %s84, %s85
      %p99 = scmp.eq.s32.totalorder %s25, 1
      %p100 = por %p98, %p99
      %p102 = scmp.ne.s32.totalorder %s85, %s101
      %p103 = scmp.eq.s32.totalorder %s25, 0
      %p104 = por %p102, %p103
      %s105 = ssub.s32 %s19, %s26
      %p106 = scmp.eq.s32.totalorder %s105, 0
      %s108 = sadd.s32 %s107, 1
      %s109 = scalar_select %p106, %s107, %s108
      %p112 = pneg %p106
      %p113 = scmp.eq.s32.totalorder %s19, 1
      %p114 = por %p112, %p113
      %p115 = scmp.ne.s32.totalorder %s107, %s110
      %p116 = scmp.eq.s32.totalorder %s19, 0
      %p117 = por %p115, %p116
      %p118 = scmp.ne.s32.totalorder %s107, %s110
      %p119 = scmp.eq.s32.totalorder %s24, 1
      %p120 = por %p118, %p119
      %p121 = scmp.ne.s32.totalorder %s110, %s111
      %p122 = scmp.eq.s32.totalorder %s24, 0
      %p123 = por %p121, %p122
      %p124 = scmp.ne.s32.totalorder %s110, %s111
      %p125 = scmp.eq.s32.totalorder %s25, 1
      %p126 = por %p124, %p125
      %p128 = scmp.ne.s32.totalorder %s111, %s127
      %p129 = scmp.eq.s32.totalorder %s25, 0
      %p130 = por %p128, %p129
      %p131 = scmp.le.s32.totalorder 1, %s19
      %p132 = scmp.lt.s32.totalorder %s19, 3
      %p133 = pnand %p131, %p132
      %p134 = pneg %p133
      // Predicated region
      $region9: #{tpu_custom_call.1} parent=5 // pred_check
        _
      $region10: #{tpu_custom_call.1} parent=5 // pred_check_branch
        %136 = sbr.rel (%p133) target = $region12
      $region11: #{tpu_custom_call.1} parent=5 // pred_region
        %s137 = ssub.s32 %s19, 1
      $region12: #{tpu_custom_call.1} parent=5 // pred_fallthru
        _
      %p138 = scmp.lt.s32.totalorder %s19, 2
      // Predicated region
      $region13: #{tpu_custom_call.1} parent=5 // pred_check
        %p139 = pneg %p138
      $region14: #{tpu_custom_call.1} parent=5 // pred_check_branch
        %141 = sbr.rel (%p139) target = $region16
      $region15: #{tpu_custom_call.1} parent=5 // pred_region
        // Predicated region
        $region17: #{tpu_custom_call.1} parent=15 // pred_check
          %p142 = pneg %p39
        $region18: #{tpu_custom_call.1} parent=15 // pred_check_branch
          %144 = sbr.rel (%p142) target = $region20
        $region19: #{tpu_custom_call.1} parent=15 // pred_region
          %p145 = scmp.lt.s32.totalorder %s19, 1
          %s146 = scalar_select %p145, %s19, 1
          %s147 = smul.addr %s146, 8
          %s148 = scalar_lea.vmem %s0, %s147
        $region20: #{tpu_custom_call.1} parent=15 // pred_fallthru
          _
        // Predicated region
        $region21: #{tpu_custom_call.1} parent=15 // pred_check
          %p149 = pneg %p65
        $region22: #{tpu_custom_call.1} parent=15 // pred_check_branch
          %151 = sbr.rel (%p149) target = $region24
        $region23: #{tpu_custom_call.1} parent=15 // pred_region
          %s152 = sand.u32 %s55, 1
          %s153 = scalar_lea.sflag [#allocation3], %s152
          %s154 = sand.u32 %s55, 1
          %s155 = smul.addr %s154, 8
          %s156 = scalar_lea.vmem [#allocation2], %s155
          %s158 = ssub.s32 128, 128
          %159 = vsyncadd %s153, %s158
          %s160 = smul.addr %s19, 128
          %s161 = scalar_lea.hbm %s1, %s160
          %s163 = sshll.u32 %s156, 4
          %s164 = int_to_ptr.vmem [resolvable:$true] %s163
          %166 = dma.hbm_to_vmem [thread:$0]  %s161, 128, %s164, %s153
        $region24: #{tpu_custom_call.1} parent=15 // pred_fallthru
          _
      $region16: #{tpu_custom_call.1} parent=5 // pred_fallthru
        _
      %p167 = scmp.le.s32.totalorder 1, %s19
      %p168 = scmp.lt.s32.totalorder %s19, 3
      %p169 = pnand %p167, %p168
      %p170 = pneg %p169
      // Predicated region
      $region25: #{tpu_custom_call.1} parent=5 // pred_check
        _
      $region26: #{tpu_custom_call.1} parent=5 // pred_check_branch
        %172 = sbr.rel (%p169) target = $region28
      $region27: #{tpu_custom_call.1} parent=5 // pred_region
        %s173 = ssub.s32 %s19, 1
        %s174 = sand.u32 %s58, 1
        %s175 = scalar_lea.sflag [#allocation3], %s174
        %s176 = sand.u32 %s58, 1
        %s177 = smul.addr %s176, 8
        %s178 = scalar_lea.vmem [#allocation2], %s177
        // Predicated region
        $region29: #{tpu_custom_call.1} parent=27 // pred_check
          %p179 = pneg %p71
        $region30: #{tpu_custom_call.1} parent=27 // pred_check_branch
          %181 = sbr.rel (%p179) target = $region32
        $region31: #{tpu_custom_call.1} parent=27 // pred_region
          %182 = dma.done %s175, 128
        $region32: #{tpu_custom_call.1} parent=27 // pred_fallthru
          _
        %p183 = scmp.lt.s32.totalorder %s24, 1
        %s184 = scalar_select %p183, %s24, 1
        %s185 = smul.addr %s184, 8
        %s186 = scalar_lea.vmem %s0, %s185
        %p187 = pneg %p45
        %p188 = pneg %p42
        %s189 = sand.u32 %s58, 1
        %s190 = scalar_lea.sflag [#allocation3], %s189
        %s191 = sand.u32 %s58, 1
        %s192 = smul.addr %s191, 8
        %s193 = scalar_lea.vmem [#allocation2], %s192
        %p194 = pneg %p71
        %p195 = pneg %p68
        %p196 = pneg %p97
        %p197 = pneg %p94
        %s198 = sand.u32 %s84, 1
        %s199 = scalar_lea.sflag [#allocation4], %s198
        %s200 = sand.u32 %s84, 1
        %s201 = smul.addr %s200, 8
        %s202 = scalar_lea.vmem [#allocation5], %s201
        %p203 = pneg %p123
        %p204 = pneg %p120
        %s205 = sand.u32 %s110, 1
        %s206 = scalar_lea.sflag [#allocation7], %s205
        %s207 = sand.u32 %s110, 1
        %s208 = smul.addr %s207, 8
        %s209 = scalar_lea.vmem [#allocation6], %s208
        %p210 = scmp.lt.s32.totalorder %s24, 1
        %s211 = scalar_select %p210, %s24, 1
        %s212 = smul.addr %s211, 8
        %s213 = scalar_lea.vmem %s0, %s212
        %v214 = vld [vmem:[%s178] sm:$0xff]
        %v215 = vmul.f32 %v214, 0.9
        %v216 = vld [vmem:[%s213] sm:$0xff]
        %v217 = vadd.f32 %v215, %v216
        %v218 = vsub.f32 %v217, 1.0
        %v219 = vmul.f32 %v218, 10.0
        %v220 = vmul.f32 %v219, 0.5
        %v221 = vtanh.pop %v220
        %v222 = vadd.f32 %v221, 1.0
        %v223 = vmul.f32 %v222, 0.5
        %224 = vst [vmem:[%s202] sm:$0xff] %v223
        %v225 = vsub.f32 1.0, %v223
        %v226 = vmul.f32 %v217, %v225
        %227 = vst [vmem:[%s209] sm:$0xff] %v226
        %s228 = sand.u32 %s84, 1
        %s229 = scalar_lea.sflag [#allocation4], %s228
        %s230 = sand.u32 %s84, 1
        %s231 = smul.addr %s230, 8
        %s232 = scalar_lea.vmem [#allocation5], %s231
        %s233 = sand.u32 %s110, 1
        %s234 = scalar_lea.sflag [#allocation7], %s233
        %s235 = sand.u32 %s110, 1
        %s236 = smul.addr %s235, 8
        %s237 = scalar_lea.vmem [#allocation6], %s236
        // Predicated region
        $region33: #{tpu_custom_call.1} parent=27 // pred_check
          %p238 = pneg %p94
        $region34: #{tpu_custom_call.1} parent=27 // pred_check_branch
          %240 = sbr.rel (%p238) target = $region36
        $region35: #{tpu_custom_call.1} parent=27 // pred_region
          %s242 = ssub.s32 128, 128
          %243 = vsyncadd %s229, %s242
          %s244 = smul.addr %s24, 128
          %s245 = scalar_lea.hbm %s2, %s244
          %s247 = sshll.u32 %s232, 4
          %s248 = int_to_ptr.vmem [resolvable:$true] %s247
          %250 = dma.vmem_to_hbm [thread:$0]  %s248, 128, %s245, %s229
        $region36: #{tpu_custom_call.1} parent=27 // pred_fallthru
          _
        // Predicated region
        $region37: #{tpu_custom_call.1} parent=27 // pred_check
          %p251 = pneg %p120
        $region38: #{tpu_custom_call.1} parent=27 // pred_check_branch
          %253 = sbr.rel (%p251) target = $region40
        $region39: #{tpu_custom_call.1} parent=27 // pred_region
          %s255 = ssub.s32 128, 128
          %256 = vsyncadd %s234, %s255
          %s257 = smul.addr %s24, 128
          %s258 = scalar_lea.hbm %s3, %s257
          %s260 = sshll.u32 %s237, 4
          %s261 = int_to_ptr.vmem [resolvable:$true] %s260
          %263 = dma.vmem_to_hbm [thread:$0]  %s261, 128, %s258, %s234
        $region40: #{tpu_custom_call.1} parent=27 // pred_fallthru
          _
      $region28: #{tpu_custom_call.1} parent=5 // pred_fallthru
        _
      %p264 = scmp.le.s32.totalorder 2, %s19
      // Predicated region
      $region41: #{tpu_custom_call.1} parent=5 // pred_check
        %p265 = pneg %p264
      $region42: #{tpu_custom_call.1} parent=5 // pred_check_branch
        %267 = sbr.rel (%p265) target = $region44
      $region43: #{tpu_custom_call.1} parent=5 // pred_region
        %s268 = ssub.s32 %s19, 2
        // Predicated region
        $region45: #{tpu_custom_call.1} parent=43 // pred_check
          %p269 = pneg %p100
        $region46: #{tpu_custom_call.1} parent=43 // pred_check_branch
          %271 = sbr.rel (%p269) target = $region48
        $region47: #{tpu_custom_call.1} parent=43 // pred_region
          %s272 = sand.u32 %s85, 1
          %s273 = scalar_lea.sflag [#allocation4], %s272
          %s274 = sand.u32 %s85, 1
          %s275 = smul.addr %s274, 8
          %s276 = scalar_lea.vmem [#allocation5], %s275
          %277 = dma.done %s273, 128
        $region48: #{tpu_custom_call.1} parent=43 // pred_fallthru
          _
        // Predicated region
        $region49: #{tpu_custom_call.1} parent=43 // pred_check
          %p278 = pneg %p126
        $region50: #{tpu_custom_call.1} parent=43 // pred_check_branch
          %280 = sbr.rel (%p278) target = $region52
        $region51: #{tpu_custom_call.1} parent=43 // pred_region
          %s281 = sand.u32 %s111, 1
          %s282 = scalar_lea.sflag [#allocation7], %s281
          %s283 = sand.u32 %s111, 1
          %s284 = smul.addr %s283, 8
          %s285 = scalar_lea.vmem [#allocation6], %s284
          %286 = dma.done %s282, 128
        $region52: #{tpu_custom_call.1} parent=43 // pred_fallthru
          _
      $region44: #{tpu_custom_call.1} parent=5 // pred_fallthru
        _
    $region6: #{tpu_custom_call.1} parent=1 // loop_footer
      %s23 = sadd.s32 1, %s19
    $region7: #{tpu_custom_call.1} parent=1 // loop_footer_branch
      %18 = sbr.rel target = $region3
    $region8: #{tpu_custom_call.1} parent=1 // loop_exit
      _
    %287 = vsyncpa [#allocation3], 1
    %s288 = scalar_lea.sflag [#allocation3], 1
    %289 = vsyncpa %s288, 1
    %290 = vsyncpa [#allocation4], 1
    %s291 = scalar_lea.sflag [#allocation4], 1
    %292 = vsyncpa %s291, 1
    %293 = vsyncpa [#allocation7], 1
    %s294 = scalar_lea.sflag [#allocation7], 1
    %295 = vsyncpa %s294, 1

</llo_original>
